<compile_context>
chip_gen: v7x
topology: tpu7x:2x2x1
jax: 0.10.0
libtpu: 0.0.40
codegen_flags: <defaults>
</compile_context>

<pallas_src>
import functools

import jax
import jax.numpy as jnp
from jax.experimental import pallas as pl
from jax.experimental.pallas import tpu as pltpu

BOTTLENECK = 128          # fixed by the module: Conv1d(C,128,1) -> Conv1d(128,C,1)
_VMEM_LIMIT = 32 << 20    # scoped VMEM limit for all pallas_calls


# --------------------------------------------------------------------------
# Fused single-pass kernel: mean -> MLP -> sigmoid -> scale in one visit.
# --------------------------------------------------------------------------
def _se_fused_kernel(x_ref, w1_ref, b1_ref, w2_ref, b2_ref, o_ref, *, inv_t):
    xb = x_ref[0]                                                     # (C, T)
    mean_c = jnp.sum(xb.astype(jnp.float32), axis=-1, keepdims=True) * inv_t  # (C,1)
    h = jnp.dot(w1_ref[...], mean_c,
                preferred_element_type=jnp.float32) + b1_ref[...]     # (128, 1)
    h = jnp.maximum(h, 0.0)                                           # ReLU
    z = jnp.dot(w2_ref[...], h,
                preferred_element_type=jnp.float32) + b2_ref[...]     # (C, 1)
    gate = jax.nn.sigmoid(z)                                          # (C, 1) f32
    # Hot multiply in the input dtype (bf16 stays bf16 on v6e/v7x).
    o_ref[...] = (x_ref[...] * gate[None].astype(x_ref.dtype)).astype(o_ref.dtype)


# --------------------------------------------------------------------------
# Two-pass fallback, pass 1: per-batch time sums (output block = accumulator).
# --------------------------------------------------------------------------
def _se_sum_kernel(x_ref, sum_ref, *, tt, t_total, ragged):
    t = pl.program_id(1)

    @pl.when(t == 0)
    def _init():
        sum_ref[...] = jnp.zeros_like(sum_ref)

    xb = x_ref[0].astype(jnp.float32)                                 # (C, tt)
    if ragged:
        # Mask lanes past the valid length of this (possibly OOB-padded) tile.
        col = jax.lax.broadcasted_iota(jnp.int32, xb.shape, 1)
        valid = t_total - t * tt
        xb = jnp.where(col < valid, xb, 0.0)
    sum_ref[...] += jnp.sum(xb, axis=-1, keepdims=True)[None]         # (1, C, 1)


# --------------------------------------------------------------------------
# Two-pass fallback, pass 2: pure mem-bound broadcast scale.
# --------------------------------------------------------------------------
def _se_scale_kernel(x_ref, gate_ref, o_ref):
    o_ref[...] = (x_ref[...] * gate_ref[...]).astype(o_ref.dtype)


# --------------------------------------------------------------------------
# Tile / budget helpers.
# --------------------------------------------------------------------------
def _fused_vmem_bytes(C, T, itemsize):
    blocks = 4 * C * T * itemsize                       # 2x double-buffered x + out
    weights = 2 * (2 * BOTTLENECK * C * 4 + (BOTTLENECK + C) * 4)
    return blocks + weights


def _choose_time_tile(T, C, itemsize, budget_bytes):
    """Largest 128-multiple tile whose pass-2 working set (double-buffered
    x + out blocks = 4*C*tt*itemsize) fits the budget; full T if it all fits."""
    max_tt = budget_bytes // (4 * C * itemsize)
    if max_tt >= T:
        return T
    return max((max_tt // 128) * 128, 128)


# --------------------------------------------------------------------------
# Forward wrapper.
# --------------------------------------------------------------------------
def se_forward(x, params, *, fused_budget_bytes=24 << 20,
               stream_budget_bytes=12 << 20):
    """x: (B, C, T). params = (w1 (128,C), b1 (128,), w2 (C,128), b2 (C,)).
    Returns x * sigmoid(conv(relu(conv(mean_T(x)))))."""
    w1, b1, w2, b2 = params
    B, C, T = x.shape
    itemsize = jnp.dtype(x.dtype).itemsize

    w1f = w1.astype(jnp.float32)
    w2f = w2.astype(jnp.float32)
    b1f = b1.astype(jnp.float32)
    b2f = b2.astype(jnp.float32)

    cp_fused = pltpu.CompilerParams(dimension_semantics=("parallel",),
                                    vmem_limit_bytes=_VMEM_LIMIT)

    # ---------------- fused single-pass path (1R + 1W of x) ----------------
    if _fused_vmem_bytes(C, T, itemsize) <= fused_budget_bytes:
        return pl.pallas_call(
            functools.partial(_se_fused_kernel, inv_t=1.0 / T),
            out_shape=jax.ShapeDtypeStruct((B, C, T), x.dtype),
            grid=(B,),
            in_specs=[
                pl.BlockSpec((1, C, T), lambda b: (b, 0, 0)),              # x
                pl.BlockSpec((BOTTLENECK, C), lambda b: (0, 0)),           # w1
                pl.BlockSpec((BOTTLENECK, 1), lambda b: (0, 0)),           # b1
                pl.BlockSpec((C, BOTTLENECK), lambda b: (0, 0)),           # w2
                pl.BlockSpec((C, 1), lambda b: (0, 0)),                    # b2
            ],
            out_specs=pl.BlockSpec((1, C, T), lambda b: (b, 0, 0)),
            compiler_params=cp_fused,
        )(x, w1f, b1f.reshape(BOTTLENECK, 1), w2f, b2f.reshape(C, 1))

    # ---------------- two-pass streaming path (large C*T) ------------------
    tt = _choose_time_tile(T, C, itemsize, stream_budget_bytes)
    n_t = pl.cdiv(T, tt)
    ragged = (T % tt) != 0

    # pass 1: per-batch time sums only (MLP hoisted out of the pipeline)
    sums = pl.pallas_call(
        functools.partial(_se_sum_kernel, tt=tt, t_total=T, ragged=ragged),
        out_shape=jax.ShapeDtypeStruct((B, C, 1), jnp.float32),
        grid=(B, n_t),
        in_specs=[pl.BlockSpec((1, C, tt), lambda b, t: (b, 0, t))],
        out_specs=pl.BlockSpec((1, C, 1), lambda b, t: (b, 0, 0)),
        compiler_params=pltpu.CompilerParams(
            dimension_semantics=("parallel", "arbitrary"),
            vmem_limit_bytes=_VMEM_LIMIT),
    )(x)

    # tiny excitation MLP on (B, C) means, in plain jnp (f32)
    s = sums[:, :, 0] * (1.0 / T)                                        # (B, C)
    h = jnp.maximum(jnp.dot(s, w1f.T) + b1f[None, :], 0.0)              # (B, 128)
    g = jax.nn.sigmoid(jnp.dot(h, w2f.T) + b2f[None, :])                # (B, C)
    gate = g.astype(x.dtype).reshape(B, C, 1)

    # pass 2: mem-bound broadcast scale, lane-dense 128-multiple tiles
    out = pl.pallas_call(
        _se_scale_kernel,
        out_shape=jax.ShapeDtypeStruct((B, C, T), x.dtype),
        grid=(B, n_t),
        in_specs=[
            pl.BlockSpec((1, C, tt), lambda b, t: (b, 0, t)),              # x
            pl.BlockSpec((1, C, 1), lambda b, t: (b, 0, 0)),               # gate
        ],
        out_specs=pl.BlockSpec((1, C, tt), lambda b, t: (b, 0, t)),
        compiler_params=pltpu.CompilerParams(
            dimension_semantics=("parallel", "parallel"),
            vmem_limit_bytes=_VMEM_LIMIT),
    )(x, gate)
    return out


# --------------------------------------------------------------------------
# Pure-JAX reference mirroring the PyTorch SEModule.forward.
# --------------------------------------------------------------------------
def se_reference(x, params):
    w1, b1, w2, b2 = params
    s = jnp.mean(x.astype(jnp.float32), axis=-1)                         # (B, C)
    h = jnp.maximum(jnp.einsum('oc,bc->bo', w1, s) + b1[None, :], 0.0)   # (B, 128)
    g = jax.nn.sigmoid(jnp.einsum('co,bo->bc', w2, h) + b2[None, :])     # (B, C)
    return x * g[:, :, None].astype(x.dtype)


def init_params(key, C):
    """Deterministic synthetic parameters (Conv1d k=1 kernels stored as (out, in))."""
    ks = jax.random.split(key, 4)
    w1 = jax.random.normal(ks[0], (BOTTLENECK, C), jnp.float32) * 0.1
    b1 = jax.random.normal(ks[1], (BOTTLENECK,), jnp.float32) * 0.1
    w2 = jax.random.normal(ks[2], (C, BOTTLENECK), jnp.float32) * 0.1
    b2 = jax.random.normal(ks[3], (C,), jnp.float32) * 0.1
    return (w1, b1, w2, b2)


if __name__ == "__main__":
    key = jax.random.PRNGKey(0)
    kx1, kx2, kp = jax.random.split(key, 3)

    # --- Test 1: small shape -> exercises the FUSED single-pass kernel -----
    B, C, T = 2, 16, 64
    x1 = jax.random.normal(kx1, (B, C, T), jnp.float32)
    params = init_params(kp, C)

    out1 = jax.block_until_ready(se_forward(x1, params))
    ref1 = se_reference(x1, params)
    assert out1.shape == (B, C, T), out1.shape
    assert jnp.allclose(out1, ref1, rtol=1e-4, atol=1e-4), (
        f"fused path: max abs err {jnp.max(jnp.abs(out1 - ref1))}")

    # --- Test 2: force the tiled two-pass path with a ragged time tail -----
    T2 = 320                                     # not a multiple of 128
    x2 = jax.random.normal(kx2, (B, C, T2), jnp.float32)
    out2 = jax.block_until_ready(
        se_forward(x2, params,
                   fused_budget_bytes=0,                      # disable fused path
                   stream_budget_bytes=4 * C * 128 * 4))      # force tt = 128
    ref2 = se_reference(x2, params)
    assert out2.shape == (B, C, T2), out2.shape
    assert jnp.allclose(out2, ref2, rtol=1e-4, atol=1e-4), (
        f"two-pass path: max abs err {jnp.max(jnp.abs(out2 - ref2))}")

    print("KERNEL_OK")
</pallas_src>

<mosaic_0001>
module attributes {stable_mosaic.version = 11 : i64} {
  func.func @_se_fused_kernel(%arg0: i32, %arg1: memref<1x16x64xf32, #tpu.memory_space<vmem>>, %arg2: memref<128x16xf32, #tpu.memory_space<vmem>>, %arg3: memref<128x1xf32, #tpu.memory_space<vmem>>, %arg4: memref<16x128xf32, #tpu.memory_space<vmem>>, %arg5: memref<16x1xf32, #tpu.memory_space<vmem>>, %arg6: memref<1x16x64xf32, #tpu.memory_space<vmem>>) attributes {dimension_semantics = [#tpu.dimension_semantics<parallel>], iteration_bounds = array<i64: 2>, scalar_prefetch = 0 : i64, scratch_operands = 0 : i64, tpu.core_type = #tpu.core_type<tc>, window_params = [{transform_indices = @transform_0, window_bounds = array<i64: 1, 16, 64>}, {pipeline_mode = #tpu.pipeline_mode<synchronous>, transform_indices = @transform_1, window_bounds = array<i64: 128, 16>}, {pipeline_mode = #tpu.pipeline_mode<synchronous>, transform_indices = @transform_2, window_bounds = array<i64: 128, 1>}, {pipeline_mode = #tpu.pipeline_mode<synchronous>, transform_indices = @transform_3, window_bounds = array<i64: 16, 128>}, {pipeline_mode = #tpu.pipeline_mode<synchronous>, transform_indices = @transform_4, window_bounds = array<i64: 16, 1>}, {transform_indices = @transform_5, window_bounds = array<i64: 1, 16, 64>}]} {
    %c0 = arith.constant 0 : index
    %c0_0 = arith.constant 0 : index
    %c0_1 = arith.constant 0 : index
    %0 = vector.load %arg1[%c0, %c0_0, %c0_1] : memref<1x16x64xf32, #tpu.memory_space<vmem>>, vector<1x16x64xf32>
    %1 = vector.shape_cast %0 : vector<1x16x64xf32> to vector<16x64xf32>
    %cst = arith.constant dense<0.000000e+00> : vector<16xf32>
    %2 = vector.multi_reduction <add>, %1, %cst [1] : vector<16x64xf32> to vector<16xf32>
    %3 = vector.shape_cast %2 : vector<16xf32> to vector<16x1xf32>
    %cst_2 = arith.constant 1.562500e-02 : f32
    %4 = vector.broadcast %cst_2 : f32 to vector<16x1xf32>
    %5 = arith.mulf %3, %4 : vector<16x1xf32>
    %c0_3 = arith.constant 0 : index
    %c0_4 = arith.constant 0 : index
    %6 = vector.load %arg2[%c0_3, %c0_4] : memref<128x16xf32, #tpu.memory_space<vmem>>, vector<128x16xf32>
    %cst_5 = arith.constant dense<0.000000e+00> : vector<128x1xf32>
    %7 = tpu.matmul %6, %5, %cst_5 {dimension_numbers = #tpu.dot_dimension_numbers<[1], [0], [0], [1], [0, 0, 1, 1], [], []>} : vector<128x16xf32>, vector<16x1xf32>, vector<128x1xf32> -> vector<128x1xf32>
    %c0_6 = arith.constant 0 : index
    %c0_7 = arith.constant 0 : index
    %8 = vector.load %arg3[%c0_6, %c0_7] : memref<128x1xf32, #tpu.memory_space<vmem>>, vector<128x1xf32>
    %9 = arith.addf %7, %8 : vector<128x1xf32>
    %cst_8 = arith.constant 0.000000e+00 : f32
    %10 = vector.broadcast %cst_8 : f32 to vector<128x1xf32>
    %11 = arith.maximumf %9, %10 : vector<128x1xf32>
    %c0_9 = arith.constant 0 : index
    %c0_10 = arith.constant 0 : index
    %12 = vector.load %arg4[%c0_9, %c0_10] : memref<16x128xf32, #tpu.memory_space<vmem>>, vector<16x128xf32>
    %cst_11 = arith.constant dense<0.000000e+00> : vector<16x1xf32>
    %13 = tpu.matmul %12, %11, %cst_11 {dimension_numbers = #tpu.dot_dimension_numbers<[1], [0], [0], [1], [0, 0, 1, 1], [], []>} : vector<16x128xf32>, vector<128x1xf32>, vector<16x1xf32> -> vector<16x1xf32>
    %c0_12 = arith.constant 0 : index
    %c0_13 = arith.constant 0 : index
    %14 = vector.load %arg5[%c0_12, %c0_13] : memref<16x1xf32, #tpu.memory_space<vmem>>, vector<16x1xf32>
    %15 = arith.addf %13, %14 : vector<16x1xf32>
    %16 = arith.negf %15 : vector<16x1xf32>
    %17 = math.exp %16 : vector<16x1xf32>
    %cst_14 = arith.constant 1.000000e+00 : f32
    %18 = vector.broadcast %cst_14 : f32 to vector<16x1xf32>
    %19 = arith.addf %18, %17 : vector<16x1xf32>
    %20 = arith.divf %18, %19 : vector<16x1xf32>
    %c0_15 = arith.constant 0 : index
    %c0_16 = arith.constant 0 : index
    %c0_17 = arith.constant 0 : index
    %21 = vector.load %arg1[%c0_15, %c0_16, %c0_17] : memref<1x16x64xf32, #tpu.memory_space<vmem>>, vector<1x16x64xf32>
    %22 = vector.shape_cast %20 : vector<16x1xf32> to vector<1x16x1xf32>
    %23 = vector.broadcast %22 : vector<1x16x1xf32> to vector<1x16x64xf32>
    %24 = arith.mulf %21, %23 : vector<1x16x64xf32>
    %c0_18 = arith.constant 0 : index
    %c0_19 = arith.constant 0 : index
    %c0_20 = arith.constant 0 : index
    %25 = vector.load %arg6[%c0_18, %c0_19, %c0_20] : memref<1x16x64xf32, #tpu.memory_space<vmem>>, vector<1x16x64xf32>
    tpu.vector_store %arg6[%c0_18, %c0_19, %c0_20], %24 {strides = array<i32>} : memref<1x16x64xf32, #tpu.memory_space<vmem>>, vector<1x16x64xf32>,
    return
  }
  func.func @transform_0(%arg0: i32) -> (i32, i32, i32) {
    %c0_i32 = arith.constant 0 : i32
    %c0_i32_0 = arith.constant 0 : i32
    %c0_i32_1 = arith.constant 0 : i32
    return %arg0, %c0_i32, %c0_i32_0 : i32, i32, i32
  }
  func.func @transform_1(%arg0: i32) -> (i32, i32) {
    %c0_i32 = arith.constant 0 : i32
    %c0_i32_0 = arith.constant 0 : i32
    %c0_i32_1 = arith.constant 0 : i32
    return %c0_i32, %c0_i32_0 : i32, i32
  }
  func.func @transform_2(%arg0: i32) -> (i32, i32) {
    %c0_i32 = arith.constant 0 : i32
    %c0_i32_0 = arith.constant 0 : i32
    %c0_i32_1 = arith.constant 0 : i32
    return %c0_i32, %c0_i32_0 : i32, i32
  }
  func.func @transform_3(%arg0: i32) -> (i32, i32) {
    %c0_i32 = arith.constant 0 : i32
    %c0_i32_0 = arith.constant 0 : i32
    %c0_i32_1 = arith.constant 0 : i32
    return %c0_i32, %c0_i32_0 : i32, i32
  }
  func.func @transform_4(%arg0: i32) -> (i32, i32) {
    %c0_i32 = arith.constant 0 : i32
    %c0_i32_0 = arith.constant 0 : i32
    %c0_i32_1 = arith.constant 0 : i32
    return %c0_i32, %c0_i32_0 : i32, i32
  }
  func.func @transform_5(%arg0: i32) -> (i32, i32, i32) {
    %c0_i32 = arith.constant 0 : i32
    %c0_i32_0 = arith.constant 0 : i32
    %c0_i32_1 = arith.constant 0 : i32
    return %arg0, %c0_i32, %c0_i32_0 : i32, i32, i32
  }
}

</mosaic_0001>

<llo_original>
// kernel: tpu_custom_call.1
$region0: #{tpu_custom_call.1}
  #allocation0 [shape = 'u32[]', space=smem, size = 0x4, offset = 0x4, fixed_abs, tag = 'smem constant byte address 0x4 - core index']
  #allocation1 [shape = 'u32[144,128]{1,0:T(1,128)}', space=vmem, size = 0x12000, scoped, tag = 'internal scratch']
  %s0 = inlined_call_operand.vmem [shape: f32[2,16,64], index: 0, kind: input, shape index: {}]
  %s1 = inlined_call_operand.vmem [shape: f32[128,16], index: 1, kind: input, shape index: {}]
  %s2 = inlined_call_operand.vmem [shape: f32[128,1], index: 2, kind: input, shape index: {}]
  %s3 = inlined_call_operand.vmem [shape: f32[16,128], index: 3, kind: input, shape index: {}]
  %s4 = inlined_call_operand.vmem [shape: f32[16,1], index: 4, kind: input, shape index: {}]
  %s5 = inlined_call_operand.hbm [shape: f32[2,16,64], index: 5, kind: output, shape index: {}]
  %s6 = sld [smem:[#allocation0]]
  $region53: #{tpu_custom_call.1} parent=0
    _
  %s8 = ssub.s32 1, %s6
  %s9 = scalar_select 0, %s8, %s6
  $region1: #{tpu_custom_call.1} parent=0
    #allocation2 [shape = 'u8[16384]{0}', space=vmem, size = 0x4000, scoped, tag = 'output window, operand 0']
    #allocation3 [shape = 's32[2]{0}', space=sflag, size = 0x8, scoped, tag = 'scoped memory for tpu_custom_call.1']
    %10 = vsyncpa [#allocation3], 0
    %s11 = scalar_lea.sflag [#allocation3], 1
    %12 = vsyncpa %s11, 0
    loop: start=0, step=1, limit=4
    $region2: #{tpu_custom_call.1} parent=1 // loop_pre_header
      _
    $region3: #{tpu_custom_call.1} parent=1 // loop_header
      %s14 = sphi 0, %s18
      %p15 = scmp.ge.s32.totalorder %s14, 4
      %s24 = sphi 0, %s26
      %s27 = sphi 0, %s24
      %s28 = sphi 0, %s27
      %s44 = sphi 0, %s28
      %s48 = sphi 0, %s48
      %s50 = sphi 0, %s48
      %s51 = sphi 0, %s50
      %s65 = sphi 0, %s51
      %s69 = sphi 0, %s69
      %s71 = sphi 0, %s69
      %s72 = sphi 0, %s71
      %s86 = sphi 0, %s72
      %s90 = sphi 0, %s90
      %s92 = sphi 0, %s90
      %s93 = sphi 0, %s92
      %s107 = sphi 0, %s93
      %s111 = sphi 0, %s111
      %s113 = sphi 0, %s111
      %s114 = sphi 0, %s113
      %s128 = sphi 0, %s114
      %s134 = sphi 0, %s136
      %s137 = sphi 0, %s134
      %s138 = sphi 0, %s137
      %s154 = sphi 0, %s138
    $region4: #{tpu_custom_call.1} parent=1 // loop_header_branch
      %17 = sbr.rel (%p15) target = $region8
    $region5: #{tpu_custom_call.1} parent=1 // loop_body
      %s19 = ssub.s32 %s14, 1
      %s20 = ssub.s32 %s14, 2
      %s21 = sadd.s32 %s14, 1
      %s22 = ssub.s32 %s14, %s21
      %p23 = scmp.eq.s32.totalorder %s22, 0
      %s25 = sadd.s32 %s24, 1
      %s26 = scalar_select %p23, %s24, %s25
      %p29 = pneg %p23
      %p30 = scmp.eq.s32.totalorder %s14, 1
      %p31 = por %p29, %p30
      %p32 = scmp.ne.s32.totalorder %s24, %s27
      %p33 = scmp.eq.s32.totalorder %s14, 0
      %p34 = por %p32, %p33
      %p35 = scmp.ne.s32.totalorder %s24, %s27
      %p36 = scmp.eq.s32.totalorder %s19, 1
      %p37 = por %p35, %p36
      %p38 = scmp.ne.s32.totalorder %s27, %s28
      %p39 = scmp.eq.s32.totalorder %s19, 0
      %p40 = por %p38, %p39
      %p41 = scmp.ne.s32.totalorder %s27, %s28
      %p42 = scmp.eq.s32.totalorder %s20, 1
      %p43 = por %p41, %p42
      %p45 = scmp.ne.s32.totalorder %s28, %s44
      %p46 = scmp.eq.s32.totalorder %s20, 0
      %p47 = por %p45, %p46
      %s49 = sadd.s32 %s48, 1
      %p52 = scmp.eq.s32.totalorder %s14, 1
      %p53 = scmp.ne.s32.totalorder %s48, %s50
      %p54 = scmp.eq.s32.totalorder %s14, 0
      %p55 = por %p53, %p54
      %p56 = scmp.ne.s32.totalorder %s48, %s50
      %p57 = scmp.eq.s32.totalorder %s19, 1
      %p58 = por %p56, %p57
      %p59 = scmp.ne.s32.totalorder %s50, %s51
      %p60 = scmp.eq.s32.totalorder %s19, 0
      %p61 = por %p59, %p60
      %p62 = scmp.ne.s32.totalorder %s50, %s51
      %p63 = scmp.eq.s32.totalorder %s20, 1
      %p64 = por %p62, %p63
      %p66 = scmp.ne.s32.totalorder %s51, %s65
      %p67 = scmp.eq.s32.totalorder %s20, 0
      %p68 = por %p66, %p67
      %s70 = sadd.s32 %s69, 1
      %p73 = scmp.eq.s32.totalorder %s14, 1
      %p74 = scmp.ne.s32.totalorder %s69, %s71
      %p75 = scmp.eq.s32.totalorder %s14, 0
      %p76 = por %p74, %p75
      %p77 = scmp.ne.s32.totalorder %s69, %s71
      %p78 = scmp.eq.s32.totalorder %s19, 1
      %p79 = por %p77, %p78
      %p80 = scmp.ne.s32.totalorder %s71, %s72
      %p81 = scmp.eq.s32.totalorder %s19, 0
      %p82 = por %p80, %p81
      %p83 = scmp.ne.s32.totalorder %s71, %s72
      %p84 = scmp.eq.s32.totalorder %s20, 1
      %p85 = por %p83, %p84
      %p87 = scmp.ne.s32.totalorder %s72, %s86
      %p88 = scmp.eq.s32.totalorder %s20, 0
      %p89 = por %p87, %p88
      %s91 = sadd.s32 %s90, 1
      %p94 = scmp.eq.s32.totalorder %s14, 1
      %p95 = scmp.ne.s32.totalorder %s90, %s92
      %p96 = scmp.eq.s32.totalorder %s14, 0
      %p97 = por %p95, %p96
      %p98 = scmp.ne.s32.totalorder %s90, %s92
      %p99 = scmp.eq.s32.totalorder %s19, 1
      %p100 = por %p98, %p99
      %p101 = scmp.ne.s32.totalorder %s92, %s93
      %p102 = scmp.eq.s32.totalorder %s19, 0
      %p103 = por %p101, %p102
      %p104 = scmp.ne.s32.totalorder %s92, %s93
      %p105 = scmp.eq.s32.totalorder %s20, 1
      %p106 = por %p104, %p105
      %p108 = scmp.ne.s32.totalorder %s93, %s107
      %p109 = scmp.eq.s32.totalorder %s20, 0
      %p110 = por %p108, %p109
      %s112 = sadd.s32 %s111, 1
      %p115 = scmp.eq.s32.totalorder %s14, 1
      %p116 = scmp.ne.s32.totalorder %s111, %s113
      %p117 = scmp.eq.s32.totalorder %s14, 0
      %p118 = por %p116, %p117
      %p119 = scmp.ne.s32.totalorder %s111, %s113
      %p120 = scmp.eq.s32.totalorder %s19, 1
      %p121 = por %p119, %p120
      %p122 = scmp.ne.s32.totalorder %s113, %s114
      %p123 = scmp.eq.s32.totalorder %s19, 0
      %p124 = por %p122, %p123
      %p125 = scmp.ne.s32.totalorder %s113, %s114
      %p126 = scmp.eq.s32.totalorder %s20, 1
      %p127 = por %p125, %p126
      %p129 = scmp.ne.s32.totalorder %s114, %s128
      %p130 = scmp.eq.s32.totalorder %s20, 0
      %p131 = por %p129, %p130
      %s132 = ssub.s32 %s14, %s21
      %p133 = scmp.eq.s32.totalorder %s132, 0
      %s135 = sadd.s32 %s134, 1
      %s136 = scalar_select %p133, %s134, %s135
      %p139 = pneg %p133
      %p140 = scmp.eq.s32.totalorder %s14, 1
      %p141 = por %p139, %p140
      %p142 = scmp.ne.s32.totalorder %s134, %s137
      %p143 = scmp.eq.s32.totalorder %s14, 0
      %p144 = por %p142, %p143
      %p145 = scmp.ne.s32.totalorder %s134, %s137
      %p146 = scmp.eq.s32.totalorder %s19, 1
      %p147 = por %p145, %p146
      %p148 = scmp.ne.s32.totalorder %s137, %s138
      %p149 = scmp.eq.s32.totalorder %s19, 0
      %p150 = por %p148, %p149
      %p151 = scmp.ne.s32.totalorder %s137, %s138
      %p152 = scmp.eq.s32.totalorder %s20, 1
      %p153 = por %p151, %p152
      %p155 = scmp.ne.s32.totalorder %s138, %s154
      %p156 = scmp.eq.s32.totalorder %s20, 0
      %p157 = por %p155, %p156
      %p158 = scmp.le.s32.totalorder 1, %s14
      %p159 = scmp.lt.s32.totalorder %s14, 3
      %p160 = pnand %p158, %p159
      %p161 = pneg %p160
      // Predicated region
      $region9: #{tpu_custom_call.1} parent=5 // pred_check
        _
      $region10: #{tpu_custom_call.1} parent=5 // pred_check_branch
        %163 = sbr.rel (%p160) target = $region12
      $region11: #{tpu_custom_call.1} parent=5 // pred_region
        %s164 = ssub.s32 %s14, 1
        // Predicated region
        $region13: #{tpu_custom_call.1} parent=11 // pred_check
          %p165 = pneg %p61
        $region14: #{tpu_custom_call.1} parent=11 // pred_check_branch
          %167 = sbr.rel (%p165) target = $region16
        $region15: #{tpu_custom_call.1} parent=11 // pred_region
          _
        $region16: #{tpu_custom_call.1} parent=11 // pred_fallthru
          _
        // Predicated region
        $region17: #{tpu_custom_call.1} parent=11 // pred_check
          %p168 = pneg %p82
        $region18: #{tpu_custom_call.1} parent=11 // pred_check_branch
          %170 = sbr.rel (%p168) target = $region20
        $region19: #{tpu_custom_call.1} parent=11 // pred_region
          _
        $region20: #{tpu_custom_call.1} parent=11 // pred_fallthru
          _
        // Predicated region
        $region21: #{tpu_custom_call.1} parent=11 // pred_check
          %p171 = pneg %p103
        $region22: #{tpu_custom_call.1} parent=11 // pred_check_branch
          %173 = sbr.rel (%p171) target = $region24
        $region23: #{tpu_custom_call.1} parent=11 // pred_region
          _
        $region24: #{tpu_custom_call.1} parent=11 // pred_fallthru
          _
        // Predicated region
        $region25: #{tpu_custom_call.1} parent=11 // pred_check
          %p174 = pneg %p124
        $region26: #{tpu_custom_call.1} parent=11 // pred_check_branch
          %176 = sbr.rel (%p174) target = $region28
        $region27: #{tpu_custom_call.1} parent=11 // pred_region
          _
        $region28: #{tpu_custom_call.1} parent=11 // pred_fallthru
          _
      $region12: #{tpu_custom_call.1} parent=5 // pred_fallthru
        _
      %p177 = scmp.lt.s32.totalorder %s14, 2
      // Predicated region
      $region29: #{tpu_custom_call.1} parent=5 // pred_check
        %p178 = pneg %p177
      $region30: #{tpu_custom_call.1} parent=5 // pred_check_branch
        %180 = sbr.rel (%p178) target = $region32
      $region31: #{tpu_custom_call.1} parent=5 // pred_region
        // Predicated region
        $region33: #{tpu_custom_call.1} parent=31 // pred_check
          %p181 = pneg %p34
        $region34: #{tpu_custom_call.1} parent=31 // pred_check_branch
          %183 = sbr.rel (%p181) target = $region36
        $region35: #{tpu_custom_call.1} parent=31 // pred_region
          %p184 = scmp.lt.s32.totalorder %s14, 1
          %s185 = scalar_select %p184, %s14, 1
          %s186 = smul.addr %s185, 2
          %s187 = smul.addr %s186, 8
          %s188 = scalar_lea.vmem %s0, %s187
        $region36: #{tpu_custom_call.1} parent=31 // pred_fallthru
          _
      $region32: #{tpu_custom_call.1} parent=5 // pred_fallthru
        _
      %p189 = scmp.le.s32.totalorder 1, %s14
      %p190 = scmp.lt.s32.totalorder %s14, 3
      %p191 = pnand %p189, %p190
      %p192 = pneg %p191
      // Predicated region
      $region37: #{tpu_custom_call.1} parent=5 // pred_check
        _
      $region38: #{tpu_custom_call.1} parent=5 // pred_check_branch
        %194 = sbr.rel (%p191) target = $region40
      $region39: #{tpu_custom_call.1} parent=5 // pred_region
        %s195 = ssub.s32 %s14, 1
        %p196 = scmp.lt.s32.totalorder %s19, 1
        %s197 = scalar_select %p196, %s19, 1
        %s198 = smul.addr %s197, 2
        %s199 = smul.addr %s198, 8
        %s200 = scalar_lea.vmem %s0, %s199
        %p201 = pneg %p40
        %p202 = pneg %p37
        %p203 = pneg %p61
        %p204 = pneg %p58
        %p205 = pneg %p82
        %p206 = pneg %p79
        %p207 = pneg %p103
        %p208 = pneg %p100
        %p209 = pneg %p124
        %p210 = pneg %p121
        %p211 = pneg %p150
        %p212 = pneg %p147
        %s213 = sand.u32 %s137, 1
        %s214 = scalar_lea.sflag [#allocation3], %s213
        %s215 = sand.u32 %s137, 1
        %s216 = smul.addr %s215, 16
        %s217 = scalar_lea.vmem [#allocation2], %s216
        %p218 = scmp.lt.s32.totalorder %s19, 1
        %s219 = scalar_select %p218, %s19, 1
        %s220 = smul.addr %s219, 2
        %s221 = smul.addr %s220, 8
        %s222 = scalar_lea.vmem %s0, %s221
        %v223 = vld [vmem:[%s222] sm:$0xff]
        %v224 = vld [vmem:[%s222 + $0x8] sm:$0xff]
        %vm225 = vcmask 523264
        %v226 = vsel %vm225, %v223, 0.0
        %227 = vadd.xlane.f32.xlu0 %v226
        %v228 = vpop.xlane.xlu0 %227
        %v229 = vsel %vm225, %v224, 0.0
        %230 = vadd.xlane.f32.xlu0 %v229
        %v231 = vpop.xlane.xlu0 %230
        %v232 = vmul.f32 %v228, 0.015625
        %v233 = vmul.f32 %v231, 0.015625
        %v234 = vld [vmem:[%s1] sm:$0xff]
        %v235 = vld [vmem:[%s1 + $0x8] sm:$0xff]
        %v236 = vld [vmem:[%s1 + $0x10] sm:$0xff]
        %v237 = vld [vmem:[%s1 + $0x18] sm:$0xff]
        %v238 = vld [vmem:[%s1 + $0x20] sm:$0xff]
        %v239 = vld [vmem:[%s1 + $0x28] sm:$0xff]
        %v240 = vld [vmem:[%s1 + $0x30] sm:$0xff]
        %v241 = vld [vmem:[%s1 + $0x38] sm:$0xff]
        %v242 = vld [vmem:[%s1 + $0x40] sm:$0xff]
        %v243 = vld [vmem:[%s1 + $0x48] sm:$0xff]
        %v244 = vld [vmem:[%s1 + $0x50] sm:$0xff]
        %v245 = vld [vmem:[%s1 + $0x58] sm:$0xff]
        %v246 = vld [vmem:[%s1 + $0x60] sm:$0xff]
        %v247 = vld [vmem:[%s1 + $0x68] sm:$0xff]
        %v248 = vld [vmem:[%s1 + $0x70] sm:$0xff]
        %v249 = vld [vmem:[%s1 + $0x78] sm:$0xff]
        %v250 = vld [vmem:[%s2] sm:$0xff]
        %v251 = vld [vmem:[%s2 + $0x8] sm:$0xff]
        %v252 = vld [vmem:[%s2 + $0x10] sm:$0xff]
        %v253 = vld [vmem:[%s2 + $0x18] sm:$0xff]
        %v254 = vld [vmem:[%s2 + $0x20] sm:$0xff]
        %v255 = vld [vmem:[%s2 + $0x28] sm:$0xff]
        %v256 = vld [vmem:[%s2 + $0x30] sm:$0xff]
        %v257 = vld [vmem:[%s2 + $0x38] sm:$0xff]
        %v258 = vld [vmem:[%s2 + $0x40] sm:$0xff]
        %v259 = vld [vmem:[%s2 + $0x48] sm:$0xff]
        %v260 = vld [vmem:[%s2 + $0x50] sm:$0xff]
        %v261 = vld [vmem:[%s2 + $0x58] sm:$0xff]
        %v262 = vld [vmem:[%s2 + $0x60] sm:$0xff]
        %v263 = vld [vmem:[%s2 + $0x68] sm:$0xff]
        %v264 = vld [vmem:[%s2 + $0x70] sm:$0xff]
        %v265 = vld [vmem:[%s2 + $0x78] sm:$0xff]
        %vm266 = vcmask 130048
        %v268 = vsel %vm266, %v234, 0
        %v271 = vsel %vm266, %v235, 0
        %v274 = vsel %vm266, %v236, 0
        %v277 = vsel %vm266, %v237, 0
        %v280 = vsel %vm266, %v238, 0
        %v283 = vsel %vm266, %v239, 0
        %v286 = vsel %vm266, %v240, 0
        %v289 = vsel %vm266, %v241, 0
        %v292 = vsel %vm266, %v242, 0
        %v295 = vsel %vm266, %v243, 0
        %v298 = vsel %vm266, %v244, 0
        %v301 = vsel %vm266, %v245, 0
        %v304 = vsel %vm266, %v246, 0
        %v307 = vsel %vm266, %v247, 0
        %v310 = vsel %vm266, %v248, 0
        %v313 = vsel %vm266, %v249, 0
        %315 = vmatprep.subr.mxu0 0.0
        %316 = vmatpush1.msra.mxu0 %v232
        %317 = vmatprep.subr.mxu0 0.0
        %318 = vmatpush1.msra.mxu0 %v233
        %319 = vmatprep.subr.mxu0 0.0
        %320 = vmatpush1.msra.mxu0 0.0
        %321 = vmatprep.subr.mxu0 0.0
        %322 = vmatpush1.msra.mxu0 0.0
        %323 = vmatprep.subr.mxu0 0.0
        %324 = vmatpush1.msra.mxu0 0.0
        %325 = vmatprep.subr.mxu0 0.0
        %326 = vmatpush1.msra.mxu0 0.0
        %327 = vmatprep.subr.mxu0 0.0
        %328 = vmatpush1.msra.mxu0 0.0
        %329 = vmatprep.subr.mxu0 0.0
        %330 = vmatpush1.msra.mxu0 0.0
        %331 = vmatprep.subr.mxu0 0.0
        %332 = vmatpush1.msra.mxu0 0.0
        %333 = vmatprep.subr.mxu0 0.0
        %334 = vmatpush1.msra.mxu0 0.0
        %335 = vmatprep.subr.mxu0 0.0
        %336 = vmatpush1.msra.mxu0 0.0
        %337 = vmatprep.subr.mxu0 0.0
        %338 = vmatpush1.msra.mxu0 0.0
        %339 = vmatprep.subr.mxu0 0.0
        %340 = vmatpush1.msra.mxu0 0.0
        %341 = vmatprep.subr.mxu0 0.0
        %342 = vmatpush1.msra.mxu0 0.0
        %343 = vmatprep.subr.mxu0 0.0
        %344 = vmatpush1.msra.mxu0 0.0
        %345 = vmatprep.subr.mxu0 0.0
        %346 = vmatpush1.msra.mxu0 0.0
        %347 = vmatprep.subr.mxu0 0.0
        %348 = vmatpush1.msra.mxu0 0.0
        %349 = vmatprep.subr.mxu0 0.0
        %350 = vmatpush1.msra.mxu0 0.0
        %351 = vmatprep.subr.mxu0 0.0
        %352 = vmatpush1.msra.mxu0 0.0
        %353 = vmatprep.subr.mxu0 0.0
        %354 = vmatpush1.msra.mxu0 0.0
        %355 = vmatprep.subr.mxu0 0.0
        %356 = vmatpush1.msra.mxu0 0.0
        %357 = vmatprep.subr.mxu0 0.0
        %358 = vmatpush1.msra.mxu0 0.0
        %359 = vmatprep.subr.mxu0 0.0
        %360 = vmatpush1.msra.mxu0 0.0
        %361 = vmatprep.subr.mxu0 0.0
        %362 = vmatpush1.msra.mxu0 0.0
        %363 = vmatprep.subr.mxu0 0.0
        %364 = vmatpush1.msra.mxu0 0.0
        %365 = vmatprep.subr.mxu0 0.0
        %366 = vmatpush1.msra.mxu0 0.0
        %367 = vmatprep.subr.mxu0 0.0
        %368 = vmatpush1.msra.mxu0 0.0
        %369 = vmatprep.subr.mxu0 0.0
        %370 = vmatpush1.msra.mxu0 0.0
        %371 = vmatprep.subr.mxu0 0.0
        %372 = vmatpush1.msra.mxu0 0.0
        %373 = vmatprep.subr.mxu0 0.0
        %374 = vmatpush1.msra.mxu0 0.0
        %375 = vmatprep.subr.mxu0 0.0
        %376 = vmatpush1.msra.mxu0 0.0
        %377 = vmatprep.subr.mxu0 0.0
        %378 = vmatpush1.msra.mxu0 0.0
        %379 = vmatprep.mubr.f32.mxu0 0.0
        %380 = vmatmul.mubr.f32.gmra.mrb[0].mxu0 %v268
        %v381 = vpop.f32.mrb[0].mxu0
        %v382 = vadd.f32 %v250, %v381
        %v383 = vpop.f32.mrb[0].mxu0
        %384 = vmatprep.mubr.f32.mxu0 0.0
        %385 = vmatmul.mubr.f32.gmra.mrb[0].mxu0 %v271
        %v386 = vpop.f32.mrb[0].mxu0
        %v387 = vadd.f32 %v251, %v386
        %v388 = vpop.f32.mrb[0].mxu0
        %389 = vmatprep.mubr.f32.mxu0 0.0
        %390 = vmatmul.mubr.f32.gmra.mrb[0].mxu0 %v274
        %v391 = vpop.f32.mrb[0].mxu0
        %v392 = vadd.f32 %v252, %v391
        %v393 = vpop.f32.mrb[0].mxu0
        %394 = vmatprep.mubr.f32.mxu0 0.0
        %395 = vmatmul.mubr.f32.gmra.mrb[0].mxu0 %v277
        %v396 = vpop.f32.mrb[0].mxu0
        %v397 = vadd.f32 %v253, %v396
        %v398 = vpop.f32.mrb[0].mxu0
        %399 = vmatprep.mubr.f32.mxu0 0.0
        %400 = vmatmul.mubr.f32.gmra.mrb[0].mxu0 %v280
        %v401 = vpop.f32.mrb[0].mxu0
        %v402 = vadd.f32 %v254, %v401
        %v403 = vpop.f32.mrb[0].mxu0
        %404 = vmatprep.mubr.f32.mxu0 0.0
        %405 = vmatmul.mubr.f32.gmra.mrb[0].mxu0 %v283
        %v406 = vpop.f32.mrb[0].mxu0
        %v407 = vadd.f32 %v255, %v406
        %v408 = vpop.f32.mrb[0].mxu0
        %409 = vmatprep.mubr.f32.mxu0 0.0
        %410 = vmatmul.mubr.f32.gmra.mrb[0].mxu0 %v286
        %v411 = vpop.f32.mrb[0].mxu0
        %v412 = vadd.f32 %v256, %v411
        %v413 = vpop.f32.mrb[0].mxu0
        %414 = vmatprep.mubr.f32.mxu0 0.0
        %415 = vmatmul.mubr.f32.gmra.mrb[0].mxu0 %v289
        %v416 = vpop.f32.mrb[0].mxu0
        %v417 = vadd.f32 %v257, %v416
        %v418 = vpop.f32.mrb[0].mxu0
        %419 = vmatprep.mubr.f32.mxu0 0.0
        %420 = vmatmul.mubr.f32.gmra.mrb[0].mxu0 %v292
        %v421 = vpop.f32.mrb[0].mxu0
        %v422 = vadd.f32 %v258, %v421
        %v423 = vpop.f32.mrb[0].mxu0
        %424 = vmatprep.mubr.f32.mxu0 0.0
        %425 = vmatmul.mubr.f32.gmra.mrb[0].mxu0 %v295
        %v426 = vpop.f32.mrb[0].mxu0
        %v427 = vadd.f32 %v259, %v426
        %v428 = vpop.f32.mrb[0].mxu0
        %429 = vmatprep.mubr.f32.mxu0 0.0
        %430 = vmatmul.mubr.f32.gmra.mrb[0].mxu0 %v298
        %v431 = vpop.f32.mrb[0].mxu0
        %v432 = vadd.f32 %v260, %v431
        %v433 = vpop.f32.mrb[0].mxu0
        %434 = vmatprep.mubr.f32.mxu0 0.0
        %435 = vmatmul.mubr.f32.gmra.mrb[0].mxu0 %v301
        %v436 = vpop.f32.mrb[0].mxu0
        %v437 = vadd.f32 %v261, %v436
        %v438 = vpop.f32.mrb[0].mxu0
        %439 = vmatprep.mubr.f32.mxu0 0.0
        %440 = vmatmul.mubr.f32.gmra.mrb[0].mxu0 %v304
        %v441 = vpop.f32.mrb[0].mxu0
        %v442 = vadd.f32 %v262, %v441
        %v443 = vpop.f32.mrb[0].mxu0
        %444 = vmatprep.mubr.f32.mxu0 0.0
        %445 = vmatmul.mubr.f32.gmra.mrb[0].mxu0 %v307
        %v446 = vpop.f32.mrb[0].mxu0
        %v447 = vadd.f32 %v263, %v446
        %v448 = vpop.f32.mrb[0].mxu0
        %449 = vmatprep.mubr.f32.mxu0 0.0
        %450 = vmatmul.mubr.f32.gmra.mrb[0].mxu0 %v310
        %v451 = vpop.f32.mrb[0].mxu0
        %v452 = vadd.f32 %v264, %v451
        %v453 = vpop.f32.mrb[0].mxu0
        %454 = vmatprep.mubr.f32.mxu0 0.0
        %455 = vmatmul.mubr.f32.gmra.mrb[0].mxu0 %v313
        %v456 = vpop.f32.mrb[0].mxu0
        %v457 = vadd.f32 %v265, %v456
        %v458 = vpop.f32.mrb[0].mxu0
        %459 = vdwg.mxu0
        %v460 = vmax.f32 %v382, 0.0
        %v461 = vmax.f32 %v387, 0.0
        %v462 = vmax.f32 %v392, 0.0
        %v463 = vmax.f32 %v397, 0.0
        %v464 = vmax.f32 %v402, 0.0
        %v465 = vmax.f32 %v407, 0.0
        %v466 = vmax.f32 %v412, 0.0
        %v467 = vmax.f32 %v417, 0.0
        %v468 = vmax.f32 %v422, 0.0
        %v469 = vmax.f32 %v427, 0.0
        %v470 = vmax.f32 %v432, 0.0
        %v471 = vmax.f32 %v437, 0.0
        %v472 = vmax.f32 %v442, 0.0
        %v473 = vmax.f32 %v447, 0.0
        %v474 = vmax.f32 %v452, 0.0
        %v475 = vmax.f32 %v457, 0.0
        %v476 = vld [vmem:[%s3] sm:$0xff]
        %v477 = vld [vmem:[%s3 + $0x8] sm:$0xff]
        %v478 = vld [vmem:[%s4] sm:$0xff]
        %v479 = vld [vmem:[%s4 + $0x8] sm:$0xff]
        %480 = vmatprep.subr.mxu0 0.0
        %481 = vmatpush1.msra.mxu0 %v460
        %482 = vmatprep.subr.mxu0 0.0
        %483 = vmatpush1.msra.mxu0 %v461
        %484 = vmatprep.subr.mxu0 0.0
        %485 = vmatpush1.msra.mxu0 %v462
        %486 = vmatprep.subr.mxu0 0.0
        %487 = vmatpush1.msra.mxu0 %v463
        %488 = vmatprep.subr.mxu0 0.0
        %489 = vmatpush1.msra.mxu0 %v464
        %490 = vmatprep.subr.mxu0 0.0
        %491 = vmatpush1.msra.mxu0 %v465
        %492 = vmatprep.subr.mxu0 0.0
        %493 = vmatpush1.msra.mxu0 %v466
        %494 = vmatprep.subr.mxu0 0.0
        %495 = vmatpush1.msra.mxu0 %v467
        %496 = vmatprep.subr.mxu0 0.0
        %497 = vmatpush1.msra.mxu0 %v468
        %498 = vmatprep.subr.mxu0 0.0
        %499 = vmatpush1.msra.mxu0 %v469
        %500 = vmatprep.subr.mxu0 0.0
        %501 = vmatpush1.msra.mxu0 %v470
        %502 = vmatprep.subr.mxu0 0.0
        %503 = vmatpush1.msra.mxu0 %v471
        %504 = vmatprep.subr.mxu0 0.0
        %505 = vmatpush1.msra.mxu0 %v472
        %506 = vmatprep.subr.mxu0 0.0
        %507 = vmatpush1.msra.mxu0 %v473
        %508 = vmatprep.subr.mxu0 0.0
        %509 = vmatpush1.msra.mxu0 %v474
        %510 = vmatprep.subr.mxu0 0.0
        %511 = vmatpush1.msra.mxu0 %v475
        %512 = vmatprep.subr.mxu0 0.0
        %513 = vmatpush1.msra.mxu0 0.0
        %514 = vmatprep.subr.mxu0 0.0
        %515 = vmatpush1.msra.mxu0 0.0
        %516 = vmatprep.subr.mxu0 0.0
        %517 = vmatpush1.msra.mxu0 0.0
        %518 = vmatprep.subr.mxu0 0.0
        %519 = vmatpush1.msra.mxu0 0.0
        %520 = vmatprep.subr.mxu0 0.0
        %521 = vmatpush1.msra.mxu0 0.0
        %522 = vmatprep.subr.mxu0 0.0
        %523 = vmatpush1.msra.mxu0 0.0
        %524 = vmatprep.subr.mxu0 0.0
        %525 = vmatpush1.msra.mxu0 0.0
        %526 = vmatprep.subr.mxu0 0.0
        %527 = vmatpush1.msra.mxu0 0.0
        %528 = vmatprep.subr.mxu0 0.0
        %529 = vmatpush1.msra.mxu0 0.0
        %530 = vmatprep.subr.mxu0 0.0
        %531 = vmatpush1.msra.mxu0 0.0
        %532 = vmatprep.subr.mxu0 0.0
        %533 = vmatpush1.msra.mxu0 0.0
        %534 = vmatprep.subr.mxu0 0.0
        %535 = vmatpush1.msra.mxu0 0.0
        %536 = vmatprep.subr.mxu0 0.0
        %537 = vmatpush1.msra.mxu0 0.0
        %538 = vmatprep.subr.mxu0 0.0
        %539 = vmatpush1.msra.mxu0 0.0
        %540 = vmatprep.subr.mxu0 0.0
        %541 = vmatpush1.msra.mxu0 0.0
        %542 = vmatprep.subr.mxu0 0.0
        %543 = vmatpush1.msra.mxu0 0.0
        %544 = vmatprep.mubr.f32.mxu0 0.0
        %545 = vmatmul.mubr.f32.gmra.mrb[0].mxu0 %v476
        %v546 = vpop.f32.mrb[0].mxu0
        %v547 = vadd.f32 %v478, %v546
        %v548 = vpop.f32.mrb[0].mxu0
        %549 = vmatprep.mubr.f32.mxu0 0.0
        %550 = vmatmul.mubr.f32.gmra.mrb[0].mxu0 %v477
        %v551 = vpop.f32.mrb[0].mxu0
        %v552 = vadd.f32 %v479, %v551
        %v553 = vpop.f32.mrb[0].mxu0
        %554 = vdwg.mxu0
        %v555 = vxor.u32 %v547, 2147483648
        %v556 = vxor.u32 %v552, 2147483648
        %v557 = vmul.f32 %v555, 1.442695
        %v558 = vpow.pop %v557
        %v559 = vmul.f32 %v556, 1.442695
        %v560 = vpow.pop %v559
        %v561 = vadd.f32 %v558, 1.0
        %v562 = vadd.f32 %v560, 1.0
        %v563 = vrcp.pop %v561
        %v564 = vmul.f32 1.0, %v563
        %v565 = vrcp.pop %v562
        %v566 = vmul.f32 1.0, %v565
        %568 = vset.pattern.permute.xlu0 0
        %569 = vperm.xlu0 %568, %v564
        %v570 = vpop.permute.xlu0 %569
        %573 = vset.pattern.permute.xlu0 0
        %574 = vperm.xlu0 %573, %v566
        %v575 = vpop.permute.xlu0 %574
        %v577 = vmul.f32 %v223, %v570
        %v578 = vmul.f32 %v224, %v575
        %579 = vst.msk [vmem:[%s217] sm:$0xff] %vm225, %v577
        %580 = vst.msk [vmem:[%s217 + $0x8] sm:$0xff] %vm225, %v578
        %s581 = sand.u32 %s137, 1
        %s582 = scalar_lea.sflag [#allocation3], %s581
        %s583 = sand.u32 %s137, 1
        %s584 = smul.addr %s583, 16
        %s585 = scalar_lea.vmem [#allocation2], %s584
        // Predicated region
        $region41: #{tpu_custom_call.1} parent=39 // pred_check
          %p586 = pneg %p147
        $region42: #{tpu_custom_call.1} parent=39 // pred_check_branch
          %588 = sbr.rel (%p586) target = $region44
        $region43: #{tpu_custom_call.1} parent=39 // pred_region
          %s590 = ssub.s32 256, 256
          %591 = vsyncadd %s582, %s590
          %s592 = smul.addr %s19, 2
          %s593 = smul.addr %s592, 128
          %s594 = scalar_lea.hbm %s5, %s593
          %s595 = sshll.u32 %s585, 4
          %s596 = int_to_ptr.vmem [resolvable:$true] %s595
          %601 = dma.vmem_to_hbm [thread:$0]  %s596, 256, %s594, %s582, 128, 128, 8
        $region44: #{tpu_custom_call.1} parent=39 // pred_fallthru
          _
      $region40: #{tpu_custom_call.1} parent=5 // pred_fallthru
        _
      %p602 = scmp.le.s32.totalorder 2, %s14
      // Predicated region
      $region45: #{tpu_custom_call.1} parent=5 // pred_check
        %p603 = pneg %p602
      $region46: #{tpu_custom_call.1} parent=5 // pred_check_branch
        %605 = sbr.rel (%p603) target = $region48
      $region47: #{tpu_custom_call.1} parent=5 // pred_region
        %s606 = ssub.s32 %s14, 2
        // Predicated region
        $region49: #{tpu_custom_call.1} parent=47 // pred_check
          %p607 = pneg %p153
        $region50: #{tpu_custom_call.1} parent=47 // pred_check_branch
          %609 = sbr.rel (%p607) target = $region52
        $region51: #{tpu_custom_call.1} parent=47 // pred_region
          %s610 = sand.u32 %s138, 1
          %s611 = scalar_lea.sflag [#allocation3], %s610
          %s612 = sand.u32 %s138, 1
          %s613 = smul.addr %s612, 16
          %s614 = scalar_lea.vmem [#allocation2], %s613
          %615 = dma.done %s611, 256
        $region52: #{tpu_custom_call.1} parent=47 // pred_fallthru
          _
      $region48: #{tpu_custom_call.1} parent=5 // pred_fallthru
        _
    $region6: #{tpu_custom_call.1} parent=1 // loop_footer
      %s18 = sadd.s32 1, %s14
    $region7: #{tpu_custom_call.1} parent=1 // loop_footer_branch
      %13 = sbr.rel target = $region3
    $region8: #{tpu_custom_call.1} parent=1 // loop_exit
      _
    %616 = vsyncpa [#allocation3], 1
    %s617 = scalar_lea.sflag [#allocation3], 1
    %618 = vsyncpa %s617, 1

</llo_original>
